<compile_context>
chip_gen: v7x
topology: tpu7x:2x2x1
jax: 0.10.0
libtpu: 0.0.40
codegen_flags: <defaults>
</compile_context>

<pallas_src>
import jax
import jax.numpy as jnp
import numpy as np
from jax.experimental import pallas as pl
from jax.experimental.pallas import tpu as pltpu

NEG_PAD = -1000.0


def _round_up(x: int, m: int) -> int:
    return (x + m - 1) // m * m


def _target_block_bytes() -> int:
    """~2 MiB blocks hit the HBM roofline knee on v5e/v6e; v7x needs larger
    blocks to amortise per-grid-step overhead against 3.2 TB/s HBM."""
    try:
        kind = jax.devices()[0].device_kind.lower()
    except Exception:
        kind = ""
    if "v7" in kind or "7x" in kind:
        return 8 << 20
    return 2 << 20


def _pick_rows_per_slab(total_rows: int, w: int, max_lanes: int = 8192) -> int:
    """How many W-wide image rows to pack per slab row (lane axis = G*W).

    Preference: (1) lane width a multiple of 128 (unmasked vst),
    (2) remaining row count a multiple of 8 (no sublane padding),
    (3) widest lane axis."""
    best_g, best_key = 1, (-1, -1, -1)
    for g in range(1, total_rows + 1):
        if total_rows % g or g * w > max_lanes:
            continue
        key = (int((g * w) % 128 == 0), int((total_rows // g) % 8 == 0), g)
        if key > best_key:
            best_key, best_g = key, g
    return best_g


def _pick_row_tile(num_rows: int, lanes: int, target_block_bytes: int) -> int:
    """Row tile: multiple of 8 (sublane constraint), sized to ~target bytes,
    and split so there are >= 2 grid steps when there is enough work (v7x
    megacore sharding of the 'parallel' axis)."""
    rows8 = _round_up(num_rows, 8)
    cap = max(8, (target_block_bytes // (lanes * 4)) // 8 * 8)
    tm = min(cap, rows8)
    if tm >= rows8 and rows8 >= 16 and rows8 % 16 == 0:
        tm = rows8 // 2
    return tm


def _h2i_kernel_factory(radius: int, width: int, lanes: int, tm: int):
    """Kernel closed over the static radius / image width / block shape."""
    width_pow2 = (width & (width - 1)) == 0

    def kernel(x_ref, o_ref):
        # x_ref / o_ref : (tm, lanes)  packed heightfield rows (lanes = G*W).
        x = x_ref[...].astype(jnp.float32)

        # Column index of every lane inside its W-wide image row.
        lane = jax.lax.broadcasted_iota(jnp.int32, (tm, lanes), 1)
        col = (lane & (width - 1)) if width_pow2 else (lane % width)

        acc = None
        for j in range(1, radius + 1):
            # padded[..., i + j]:
            #   col + j <  W : in-row neighbour, brought into lane i by a roll
            #                  (lanes where the roll wraps across an image-row
            #                  or slab boundary are masked off below),
            #   col + j >= W : the constant -1000 padding.
            shifted = pltpu.roll(x, shift=(lanes - j) % lanes, axis=1)
            neighbor = jnp.where(col < (width - j), shifted, NEG_PAD)
            cand = neighbor - float(j)
            acc = cand if acc is None else jnp.maximum(acc, cand)

        o_ref[...] = (acc - x).astype(o_ref.dtype)

    return kernel


def h2i_pallas(heightfield: jax.Array, radius: int) -> jax.Array:
    """heightfield: (B, C, H, W) float. Returns (B, C, H, W)."""
    assert radius >= 1
    B, C, H, W = heightfield.shape
    total_rows = B * C * H

    # Pack G image rows per slab row -> wide lane axis; contiguous reshape.
    G = _pick_rows_per_slab(total_rows, W)
    num_rows = total_rows // G
    lanes = G * W
    x2d = heightfield.reshape(num_rows, lanes)

    # Lane-dense output: pad lane axis to a multiple of 128 if needed.
    lanes_p = _round_up(lanes, 128)
    if lanes_p != lanes:
        x2d = jnp.pad(x2d, ((0, 0), (0, lanes_p - lanes)))

    tm = _pick_row_tile(num_rows, lanes_p, _target_block_bytes())
    grid_rows = pl.cdiv(num_rows, tm)
    rows_p = grid_rows * tm
    if rows_p != num_rows:
        x2d = jnp.pad(x2d, ((0, rows_p - num_rows), (0, 0)))

    kernel = _h2i_kernel_factory(radius, W, lanes_p, tm)

    block_bytes = tm * lanes_p * 4
    vmem_limit = int(min(48 << 20, max(32 << 20, 6 * block_bytes)))

    out2d = pl.pallas_call(
        kernel,
        out_shape=jax.ShapeDtypeStruct((rows_p, lanes_p), heightfield.dtype),
        grid_spec=pltpu.PrefetchScalarGridSpec(
            num_scalar_prefetch=0,
            grid=(grid_rows,),
            in_specs=[pl.BlockSpec((tm, lanes_p), lambda i: (i, 0))],
            out_specs=pl.BlockSpec((tm, lanes_p), lambda i: (i, 0)),
        ),
        compiler_params=pltpu.CompilerParams(
            dimension_semantics=("parallel",),
            vmem_limit_bytes=vmem_limit,
        ),
    )(x2d)

    if rows_p != num_rows or lanes_p != lanes:
        out2d = out2d[:num_rows, :lanes]
    return out2d.reshape(B, C, H, W)


def h2i_reference(heightfield: np.ndarray, radius: int) -> np.ndarray:
    """Pure-numpy reference mirroring the PyTorch forward."""
    B, C, H, W = heightfield.shape
    padded = np.pad(heightfield, ((0, 0), (0, 0), (0, 0), (0, radius)),
                    constant_values=NEG_PAD)
    buffer_vector = np.arange(1, radius + 1, dtype=np.float32)        # (r,)
    selecting = np.arange(W)[:, None] + np.arange(1, radius + 1)      # (W, r)
    unroll = padded[:, :, :, selecting] - buffer_vector               # (B,C,H,W,r)
    compare = unroll.max(axis=4)
    return compare - heightfield


if __name__ == "__main__":
    key = jax.random.PRNGKey(0)
    B, C, H, W = 2, 4, 16, 16     # im_size = 16
    radius = 5

    heightfield = jax.random.uniform(key, (B, C, H, W), dtype=jnp.float32,
                                     minval=0.0, maxval=8.0)

    out = h2i_pallas(heightfield, radius)
    out = jax.block_until_ready(out)

    ref = h2i_reference(np.asarray(heightfield), radius)
    np.testing.assert_allclose(np.asarray(out), ref, rtol=1e-5, atol=1e-5)

    print("KERNEL_OK")
</pallas_src>

<mosaic_0001>
module attributes {stable_mosaic.version = 11 : i64} {
  func.func @kernel(%arg0: i32, %arg1: memref<8x256xf32, #tpu.memory_space<vmem>>, %arg2: memref<8x256xf32, #tpu.memory_space<vmem>>) attributes {dimension_semantics = [#tpu.dimension_semantics<parallel>], iteration_bounds = array<i64: 1>, scalar_prefetch = 0 : i64, scratch_operands = 0 : i64, tpu.core_type = #tpu.core_type<tc>, window_params = [{transform_indices = @transform_0, window_bounds = array<i64: 8, 256>}, {transform_indices = @transform_1, window_bounds = array<i64: 8, 256>}]} {
    %c0 = arith.constant 0 : index
    %c0_0 = arith.constant 0 : index
    %0 = vector.load %arg1[%c0, %c0_0] : memref<8x256xf32, #tpu.memory_space<vmem>>, vector<8x256xf32>
    %1 = tpu.iota {dimensions = array<i32: 1>} : vector<8x256xi32>
    %c15_i32 = arith.constant 15 : i32
    %2 = vector.broadcast %c15_i32 : i32 to vector<8x256xi32>
    %3 = arith.andi %1, %2 : vector<8x256xi32>
    %c255_i32 = arith.constant 255 : i32
    %4 = tpu.dynamic_rotate %0 by %c255_i32 dim 1 : vector<8x256xf32>, i32 -> vector<8x256xf32>
    %c15_i32_1 = arith.constant 15 : i32
    %5 = vector.broadcast %c15_i32_1 : i32 to vector<8x256xi32>
    %6 = arith.cmpi slt, %3, %5 : vector<8x256xi32>
    %cst = arith.constant -1.000000e+03 : f32
    %7 = vector.broadcast %cst : f32 to vector<8x256xf32>
    %8 = arith.select %6, %4, %7 : vector<8x256xi1>, vector<8x256xf32>
    %cst_2 = arith.constant 1.000000e+00 : f32
    %9 = vector.broadcast %cst_2 : f32 to vector<8x256xf32>
    %10 = arith.subf %8, %9 : vector<8x256xf32>
    %c254_i32 = arith.constant 254 : i32
    %11 = tpu.dynamic_rotate %0 by %c254_i32 dim 1 : vector<8x256xf32>, i32 -> vector<8x256xf32>
    %c14_i32 = arith.constant 14 : i32
    %12 = vector.broadcast %c14_i32 : i32 to vector<8x256xi32>
    %13 = arith.cmpi slt, %3, %12 : vector<8x256xi32>
    %cst_3 = arith.constant -1.000000e+03 : f32
    %14 = vector.broadcast %cst_3 : f32 to vector<8x256xf32>
    %15 = arith.select %13, %11, %14 : vector<8x256xi1>, vector<8x256xf32>
    %cst_4 = arith.constant 2.000000e+00 : f32
    %16 = vector.broadcast %cst_4 : f32 to vector<8x256xf32>
    %17 = arith.subf %15, %16 : vector<8x256xf32>
    %18 = arith.maximumf %10, %17 : vector<8x256xf32>
    %c253_i32 = arith.constant 253 : i32
    %19 = tpu.dynamic_rotate %0 by %c253_i32 dim 1 : vector<8x256xf32>, i32 -> vector<8x256xf32>
    %c13_i32 = arith.constant 13 : i32
    %20 = vector.broadcast %c13_i32 : i32 to vector<8x256xi32>
    %21 = arith.cmpi slt, %3, %20 : vector<8x256xi32>
    %cst_5 = arith.constant -1.000000e+03 : f32
    %22 = vector.broadcast %cst_5 : f32 to vector<8x256xf32>
    %23 = arith.select %21, %19, %22 : vector<8x256xi1>, vector<8x256xf32>
    %cst_6 = arith.constant 3.000000e+00 : f32
    %24 = vector.broadcast %cst_6 : f32 to vector<8x256xf32>
    %25 = arith.subf %23, %24 : vector<8x256xf32>
    %26 = arith.maximumf %18, %25 : vector<8x256xf32>
    %c252_i32 = arith.constant 252 : i32
    %27 = tpu.dynamic_rotate %0 by %c252_i32 dim 1 : vector<8x256xf32>, i32 -> vector<8x256xf32>
    %c12_i32 = arith.constant 12 : i32
    %28 = vector.broadcast %c12_i32 : i32 to vector<8x256xi32>
    %29 = arith.cmpi slt, %3, %28 : vector<8x256xi32>
    %cst_7 = arith.constant -1.000000e+03 : f32
    %30 = vector.broadcast %cst_7 : f32 to vector<8x256xf32>
    %31 = arith.select %29, %27, %30 : vector<8x256xi1>, vector<8x256xf32>
    %cst_8 = arith.constant 4.000000e+00 : f32
    %32 = vector.broadcast %cst_8 : f32 to vector<8x256xf32>
    %33 = arith.subf %31, %32 : vector<8x256xf32>
    %34 = arith.maximumf %26, %33 : vector<8x256xf32>
    %c251_i32 = arith.constant 251 : i32
    %35 = tpu.dynamic_rotate %0 by %c251_i32 dim 1 : vector<8x256xf32>, i32 -> vector<8x256xf32>
    %c11_i32 = arith.constant 11 : i32
    %36 = vector.broadcast %c11_i32 : i32 to vector<8x256xi32>
    %37 = arith.cmpi slt, %3, %36 : vector<8x256xi32>
    %cst_9 = arith.constant -1.000000e+03 : f32
    %38 = vector.broadcast %cst_9 : f32 to vector<8x256xf32>
    %39 = arith.select %37, %35, %38 : vector<8x256xi1>, vector<8x256xf32>
    %cst_10 = arith.constant 5.000000e+00 : f32
    %40 = vector.broadcast %cst_10 : f32 to vector<8x256xf32>
    %41 = arith.subf %39, %40 : vector<8x256xf32>
    %42 = arith.maximumf %34, %41 : vector<8x256xf32>
    %43 = arith.subf %42, %0 : vector<8x256xf32>
    %c0_11 = arith.constant 0 : index
    %c0_12 = arith.constant 0 : index
    %44 = vector.load %arg2[%c0_11, %c0_12] : memref<8x256xf32, #tpu.memory_space<vmem>>, vector<8x256xf32>
    tpu.vector_store %arg2[%c0_11, %c0_12], %43 {strides = array<i32>} : memref<8x256xf32, #tpu.memory_space<vmem>>, vector<8x256xf32>,
    return
  }
  func.func @transform_0(%arg0: i32) -> (i32, i32) {
    %c0_i32 = arith.constant 0 : i32
    %c0_i32_0 = arith.constant 0 : i32
    return %arg0, %c0_i32 : i32, i32
  }
  func.func @transform_1(%arg0: i32) -> (i32, i32) {
    %c0_i32 = arith.constant 0 : i32
    %c0_i32_0 = arith.constant 0 : i32
    return %arg0, %c0_i32 : i32, i32
  }
}

</mosaic_0001>

<llo_original>
// kernel: tpu_custom_call.1
$region0: #{tpu_custom_call.1}
  #allocation0 [shape = 'u32[]', space=smem, size = 0x4, offset = 0x4, fixed_abs, tag = 'smem constant byte address 0x4 - core index']
  #allocation1 [shape = 'u32[144,128]{1,0:T(1,128)}', space=vmem, size = 0x12000, scoped, tag = 'internal scratch']
  %s0 = inlined_call_operand.hbm [shape: f32[8,256], index: 0, kind: input, shape index: {}]
  %s1 = inlined_call_operand.hbm [shape: f32[8,256], index: 1, kind: output, shape index: {}]
  %s2 = sld [smem:[#allocation0]]
  $region18: #{tpu_custom_call.1} parent=0
    _
  %s4 = ssub.s32 1, %s2
  %s5 = scalar_select 0, %s4, %s2
  $region1: #{tpu_custom_call.1} parent=0
    #allocation2 [shape = 'u8[8192]{0}', space=vmem, size = 0x2000, scoped, tag = 'input window, operand 0, single buffered']
    #allocation3 [shape = 's32[1]{0}', space=sflag, size = 0x4, scoped, tag = 'scoped memory for tpu_custom_call.1']
    #allocation4 [shape = 's32[1]{0}', space=sflag, size = 0x4, scoped, tag = 'scoped memory for tpu_custom_call.1']
    #allocation5 [shape = 'u8[8192]{0}', space=vmem, size = 0x2000, scoped, tag = 'output window, operand 0, single buffered']
    %6 = vsyncpa [#allocation3], 0
    %7 = vsyncpa [#allocation4], 0
    // Predicated region
    $region2: #{tpu_custom_call.1} parent=1 // pred_check
      _
    $region3: #{tpu_custom_call.1} parent=1 // pred_check_branch
      %9 = sbr.rel (0) target = $region5
    $region4: #{tpu_custom_call.1} parent=1 // pred_region
      %s11 = ssub.s32 256, 256
      %12 = vsyncadd [#allocation3], %s11
      %s14 = sshll.u32 [#allocation2], 4
      %s15 = int_to_ptr.vmem [resolvable:$true] %s14
      %17 = dma.hbm_to_vmem [thread:$0]  %s0, 256, %s15, [#allocation3]
    $region5: #{tpu_custom_call.1} parent=1 // pred_fallthru
      _
    // Predicated region
    $region6: #{tpu_custom_call.1} parent=1 // pred_check
      _
    $region7: #{tpu_custom_call.1} parent=1 // pred_check_branch
      %19 = sbr.rel (0) target = $region9
    $region8: #{tpu_custom_call.1} parent=1 // pred_region
      %20 = dma.done [#allocation3], 256
    $region9: #{tpu_custom_call.1} parent=1 // pred_fallthru
      _
    %v21 = vld [vmem:[#allocation2] sm:$0xff]
    %v22 = vld [vmem:[#allocation2 + $0x8] sm:$0xff]
    %v23 = vlaneseq
    %v24 = vand.u32 %v23, 127
    %v25 = vadd.s32 %v24, 128
    %v26 = vand.u32 %v24, 15
    %v27 = vand.u32 %v25, 15
    %28 = vrot.lane.b32.xlu0 %v21, 127
    %v29 = vpop.permute.xlu0 %28
    %30 = vrot.lane.b32.xlu0 %v22, 127
    %v31 = vpop.permute.xlu0 %30
    %vm32 = vcmp.lt.s32.totalorder %v24, 127
    %v33 = vsel %vm32, %v29, %v31
    %v34 = vsel %vm32, %v31, %v29
    %vm35 = vcmp.lt.s32.totalorder %v26, 15
    %vm36 = vcmp.lt.s32.totalorder %v27, 15
    %v37 = vsel %vm35, %v33, -1000.0
    %v38 = vsel %vm36, %v34, -1000.0
    %v39 = vsub.f32 %v37, 1.0
    %v40 = vsub.f32 %v38, 1.0
    %41 = vrot.lane.b32.xlu0 %v21, 126
    %v42 = vpop.permute.xlu0 %41
    %43 = vrot.lane.b32.xlu0 %v22, 126
    %v44 = vpop.permute.xlu0 %43
    %vm45 = vcmp.lt.s32.totalorder %v24, 126
    %v46 = vsel %vm45, %v42, %v44
    %v47 = vsel %vm45, %v44, %v42
    %vm48 = vcmp.lt.s32.totalorder %v26, 14
    %vm49 = vcmp.lt.s32.totalorder %v27, 14
    %v50 = vsel %vm48, %v46, -1000.0
    %v51 = vsel %vm49, %v47, -1000.0
    %v52 = vsub.f32 %v50, 2.0
    %v53 = vsub.f32 %v51, 2.0
    %v54 = vmax.f32 %v39, %v52
    %v55 = vmax.f32 %v40, %v53
    %56 = vrot.lane.b32.xlu0 %v21, 125
    %v57 = vpop.permute.xlu0 %56
    %58 = vrot.lane.b32.xlu0 %v22, 125
    %v59 = vpop.permute.xlu0 %58
    %vm60 = vcmp.lt.s32.totalorder %v24, 125
    %v61 = vsel %vm60, %v57, %v59
    %v62 = vsel %vm60, %v59, %v57
    %vm63 = vcmp.lt.s32.totalorder %v26, 13
    %vm64 = vcmp.lt.s32.totalorder %v27, 13
    %v65 = vsel %vm63, %v61, -1000.0
    %v66 = vsel %vm64, %v62, -1000.0
    %v67 = vsub.f32 %v65, 3.0
    %v68 = vsub.f32 %v66, 3.0
    %v69 = vmax.f32 %v54, %v67
    %v70 = vmax.f32 %v55, %v68
    %71 = vrot.lane.b32.xlu0 %v21, 124
    %v72 = vpop.permute.xlu0 %71
    %73 = vrot.lane.b32.xlu0 %v22, 124
    %v74 = vpop.permute.xlu0 %73
    %vm75 = vcmp.lt.s32.totalorder %v24, 124
    %v76 = vsel %vm75, %v72, %v74
    %v77 = vsel %vm75, %v74, %v72
    %vm78 = vcmp.lt.s32.totalorder %v26, 12
    %vm79 = vcmp.lt.s32.totalorder %v27, 12
    %v80 = vsel %vm78, %v76, -1000.0
    %v81 = vsel %vm79, %v77, -1000.0
    %v82 = vsub.f32 %v80, 4.0
    %v83 = vsub.f32 %v81, 4.0
    %v84 = vmax.f32 %v69, %v82
    %v85 = vmax.f32 %v70, %v83
    %86 = vrot.lane.b32.xlu0 %v21, 123
    %v87 = vpop.permute.xlu0 %86
    %88 = vrot.lane.b32.xlu0 %v22, 123
    %v89 = vpop.permute.xlu0 %88
    %vm90 = vcmp.lt.s32.totalorder %v24, 123
    %v91 = vsel %vm90, %v87, %v89
    %v92 = vsel %vm90, %v89, %v87
    %vm93 = vcmp.lt.s32.totalorder %v26, 11
    %vm94 = vcmp.lt.s32.totalorder %v27, 11
    %v95 = vsel %vm93, %v91, -1000.0
    %v96 = vsel %vm94, %v92, -1000.0
    %v97 = vsub.f32 %v95, 5.0
    %v98 = vsub.f32 %v96, 5.0
    %v99 = vmax.f32 %v84, %v97
    %v100 = vmax.f32 %v85, %v98
    %v101 = vsub.f32 %v99, %v21
    %v102 = vsub.f32 %v100, %v22
    %103 = vst [vmem:[#allocation5] sm:$0xff] %v101
    %104 = vst [vmem:[#allocation5 + $0x8] sm:$0xff] %v102
    // Predicated region
    $region10: #{tpu_custom_call.1} parent=1 // pred_check
      _
    $region11: #{tpu_custom_call.1} parent=1 // pred_check_branch
      %106 = sbr.rel (0) target = $region13
    $region12: #{tpu_custom_call.1} parent=1 // pred_region
      %s108 = ssub.s32 256, 256
      %109 = vsyncadd [#allocation4], %s108
      %s111 = sshll.u32 [#allocation5], 4
      %s112 = int_to_ptr.vmem [resolvable:$true] %s111
      %114 = dma.vmem_to_hbm [thread:$0]  %s112, 256, %s1, [#allocation4]
    $region13: #{tpu_custom_call.1} parent=1 // pred_fallthru
      _
    // Predicated region
    $region14: #{tpu_custom_call.1} parent=1 // pred_check
      _
    $region15: #{tpu_custom_call.1} parent=1 // pred_check_branch
      %116 = sbr.rel (0) target = $region17
    $region16: #{tpu_custom_call.1} parent=1 // pred_region
      %117 = dma.done [#allocation4], 256
    $region17: #{tpu_custom_call.1} parent=1 // pred_fallthru
      _
    %118 = vsyncpa [#allocation3], 1
    %119 = vsyncpa [#allocation4], 1

</llo_original>
